<compile_context>
chip_gen: v7x
topology: tpu7x:2x2x1
jax: 0.10.0
libtpu: 0.0.40
codegen_flags: <defaults>
</compile_context>

<pallas_src>
import functools

import jax
import jax.numpy as jnp
import numpy as np
from jax.experimental import pallas as pl
from jax.experimental.pallas import tpu as pltpu


def _gd_kernel(rc_ref, x_ref, y_ref, out_ref, acc_ref, *, inv_denom, h, w, bc,
               tb, inner, use_roll, needs_mask, compute_dtype):
    """rc_ref: (2, H*W) int32 (row 0 = row index, row 1 = col index).
    x_ref, y_ref: (TB, H*W) blocks of the flattened inputs (native dtype).
    out_ref: (1, 1, 1) per-core partial result.
    acc_ref: (1, H*W) f32 running partial sum (updated every step; reduced once)."""
    p = pl.program_id(0)
    i = pl.program_id(1)
    hw = h * w

    @pl.when(i == 0)
    def _init():
        acc_ref[...] = jnp.zeros_like(acc_ref)

    x = x_ref[...].astype(compute_dtype)
    y = y_ref[...].astype(compute_dtype)

    # Hoisted (1, H*W) replicate-edge masks, shared by x and y (no per-block
    # iotas, no integer div/mod in the kernel).
    row_idx = rc_ref[0:1, :]
    col_idx = rc_ref[1:2, :]
    first_row = row_idx == 0
    last_row = row_idx == (h - 1)
    first_col = col_idx == 0
    last_col = col_idx == (w - 1)

    def shifted(a, s):
        # shifted(a, s)[p] == a[(p - s) mod hw]; wrap positions are fixed by masks.
        if use_roll:
            return pltpu.roll(a, s, axis=1)          # XLU rotate (free-ish slot)
        return jnp.concatenate([a[:, hw - s:], a[:, :hw - s]], axis=1)

    def grad_u(a):  # d/d(row): flat shift by +-W
        if h == 1:
            return jnp.zeros_like(a)
        prev = jnp.where(first_row, a, shifted(a, w))
        nxt = jnp.where(last_row, a, shifted(a, hw - w))
        return nxt - prev

    def grad_v(a):  # d/d(col): flat shift by +-1
        if w == 1:
            return jnp.zeros_like(a)
        prev = jnp.where(first_col, a, shifted(a, 1))
        nxt = jnp.where(last_col, a, shifted(a, hw - 1))
        return nxt - prev

    diff_u = jnp.abs(jnp.abs(grad_u(x)) - jnp.abs(grad_u(y)))
    diff_v = jnp.abs(jnp.abs(grad_v(x)) - jnp.abs(grad_v(y)))
    diff_map = (diff_u + diff_v).astype(jnp.float32)  # 0.5 folded into inv_denom

    if needs_mask:
        start = (p * inner + i) * tb
        is_full = (start + tb) <= bc

        @pl.when(is_full)
        def _acc_full():
            acc_ref[...] += jnp.sum(diff_map, axis=0, keepdims=True)

        @pl.when(jnp.logical_not(is_full))
        def _acc_tail():
            rows = jax.lax.broadcasted_iota(jnp.int32, (tb, 1), 0)
            rmask = rows < (bc - start)   # <=0 => fully masked duplicate block
            acc_ref[...] += jnp.sum(jnp.where(rmask, diff_map, 0.0), axis=0,
                                    keepdims=True)
    else:
        acc_ref[...] += jnp.sum(diff_map, axis=0, keepdims=True)

    @pl.when(i == pl.num_programs(1) - 1)
    def _finalize():
        total = jnp.sum(acc_ref[...]) * jnp.float32(inv_denom)
        out_ref[...] = jnp.broadcast_to(total, (1, 1, 1))


def _detect_tensorcores_per_chip():
    """Best-effort TensorCores-per-chip query; returns 1 (safe) if unknown."""
    try:
        info = pltpu.get_tpu_info()
    except Exception:
        return 1
    for name in ("num_tensorcores", "tensorcores_per_chip", "cores_per_chip",
                 "num_cores_per_chip"):
        v = getattr(info, name, None)
        if isinstance(v, int) and 1 <= v <= 8:
            return v
    return 1


def gradient_difference_2d(x, y, reduction="mean", *, num_parallel=None,
                           compute_in_input_dtype=False,
                           max_images_per_block=None):
    """Pallas TPU implementation of GradientDifference2d.forward
    (grad_method='default', gauss_sigma=None)."""
    # TODO(synk): gauss_sigma pre-smoothing, non-'default' grad_method and the
    # return_map=True (per-pixel map) output are not implemented.
    if x.ndim != 4 or y.ndim != 4:
        raise ValueError("expected 4D NCHW inputs")
    if x.shape[1] != y.shape[1]:
        # Upcast before the channel mean so bf16 inputs don't lose precision.
        x = jnp.mean(x.astype(jnp.float32), axis=1, keepdims=True)
        y = jnp.mean(y.astype(jnp.float32), axis=1, keepdims=True)
    if x.shape != y.shape:
        raise ValueError("x and y must have the same shape")

    b, c, h, w = x.shape
    bc, hw = b * c, h * w

    if reduction == "mean":
        inv_denom = 0.5 / float(bc * hw)   # 0.5 of diff_map folded in
    elif reduction == "sum":
        inv_denom = 0.5
    else:
        raise KeyError("unsupported reduction type: %s" % reduction)

    # Lane-dense layout: flatten each image to a single (H*W,) lane vector.
    # Row-major reshape is free (no HBM copy); inputs stream in native dtype.
    xf = x.reshape(bc, hw)
    yf = y.reshape(bc, hw)

    if num_parallel is None:
        num_parallel = _detect_tensorcores_per_chip()
    num_parallel = max(1, int(num_parallel))
    per_core = int(pl.cdiv(bc, num_parallel))

    # ---- block sizing against an explicit VMEM budget ----------------------
    itemsize = max(xf.dtype.itemsize, yf.dtype.itemsize)
    img_in_bytes = hw * itemsize
    img_f32_bytes = hw * 4
    _N_TMP = 8                   # live block-sized f32 temporaries (conservative)
    _VMEM_BUDGET = 40 << 20      # safe w.r.t. v7x's 64 MiB physical VMEM
    _TARGET_BLOCK = 2 << 20      # ~2 MiB per input per pipeline buffer
    per_img_cost = 4 * img_in_bytes + _N_TMP * img_f32_bytes
    if per_img_cost > _VMEM_BUDGET:
        # TODO(synk): H-tile with a 1-row halo (manual DMA) for very large
        # single images instead of erroring out.
        raise NotImplementedError(
            "single %dx%d image too large for whole-image VMEM blocks" % (h, w))
    tb = max(1, min(_TARGET_BLOCK // img_in_bytes,
                    (_VMEM_BUDGET - img_f32_bytes) // per_img_cost))
    if max_images_per_block is not None:
        tb = min(tb, int(max_images_per_block))
    if num_parallel > 1:
        tb = min(tb, -(-per_core // 8) * 8)   # give every core some work
    if tb >= bc:
        tb = bc                               # block == full first dim
    else:
        tb = max(8, (tb // 8) * 8)            # keep sublane block 8-aligned
        tb = min(tb, bc)

    inner = max(1, int(pl.cdiv(per_core, tb)))
    n_real_blocks = int(pl.cdiv(bc, tb))
    # No HBM-copying jnp.pad: non-dividing tails are partial blocks + in-kernel mask.
    needs_mask = (num_parallel * inner * tb) != bc

    # Row/col index vectors for the replicate-edge fixups (built host-side so
    # the kernel needs no integer div/mod).
    rows_np = np.repeat(np.arange(h, dtype=np.int32), w)
    cols_np = np.tile(np.arange(w, dtype=np.int32), h)
    rc_idx = jnp.asarray(np.stack([rows_np, cols_np], axis=0))  # (2, hw) int32

    if compute_in_input_dtype and xf.dtype == yf.dtype:
        # Cheaper on v6e/v7x (native bf16 VPU) but drifts slightly from an f32
        # reference; accumulation stays f32 either way. Off by default (v5e
        # has no bf16 VALU and the f32 path matches the reference tolerance).
        compute_dtype = xf.dtype
    else:
        compute_dtype = jnp.float32

    use_roll = (hw % 128) == 0   # XLU lane-roll path when the flat dim is lane-aligned

    kernel = functools.partial(
        _gd_kernel, inv_denom=inv_denom, h=h, w=w, bc=bc, tb=tb, inner=inner,
        use_roll=use_roll, needs_mask=needs_mask, compute_dtype=compute_dtype)

    n_elem = bc * hw
    cost = pl.CostEstimate(
        flops=26 * n_elem,
        transcendentals=0,
        bytes_accessed=n_elem * (xf.dtype.itemsize + yf.dtype.itemsize)
        + rc_idx.size * 4 + num_parallel * 4)

    core_sem = pltpu.CORE_PARALLEL if num_parallel > 1 else pltpu.ARBITRARY
    last_block = n_real_blocks - 1
    data_map = lambda p, i: (jnp.minimum(p * inner + i, last_block), 0)

    out = pl.pallas_call(
        kernel,
        out_shape=jax.ShapeDtypeStruct((num_parallel, 1, 1), jnp.float32),
        grid_spec=pltpu.PrefetchScalarGridSpec(
            num_scalar_prefetch=0,
            grid=(num_parallel, inner),
            in_specs=[
                pl.BlockSpec((2, hw), lambda p, i: (0, 0)),   # rc_idx (tiny, resident)
                pl.BlockSpec((tb, hw), data_map),             # x images
                pl.BlockSpec((tb, hw), data_map),             # y images
            ],
            out_specs=pl.BlockSpec((1, 1, 1), lambda p, i: (p, 0, 0)),
            scratch_shapes=[pltpu.VMEM((1, hw), jnp.float32)],
        ),
        compiler_params=pltpu.CompilerParams(
            dimension_semantics=(core_sem, pltpu.ARBITRARY),
            vmem_limit_bytes=48 * 1024 * 1024,
        ),
        cost_estimate=cost,
    )(rc_idx, xf, yf)

    # Sum the per-core partials (each already scaled by inv_denom).
    return jnp.sum(out)


def _reference(x, y, reduction="mean"):
    """Plain-JAX reference (replicate-padded central differences, f32 math)."""
    if x.shape[1] != y.shape[1]:
        x = jnp.mean(x.astype(jnp.float32), axis=1, keepdims=True)
        y = jnp.mean(y.astype(jnp.float32), axis=1, keepdims=True)
    x = x.astype(jnp.float32)
    y = y.astype(jnp.float32)

    def grad_u(a):
        ap = jnp.pad(a, ((0, 0), (0, 0), (1, 1), (0, 0)), mode="edge")
        return ap[:, :, 2:, :] - ap[:, :, :-2, :]

    def grad_v(a):
        ap = jnp.pad(a, ((0, 0), (0, 0), (0, 0), (1, 1)), mode="edge")
        return ap[:, :, :, 2:] - ap[:, :, :, :-2]

    diff_u = jnp.abs(jnp.abs(grad_u(x)) - jnp.abs(grad_u(y)))
    diff_v = jnp.abs(jnp.abs(grad_v(x)) - jnp.abs(grad_v(y)))
    diff_map = 0.5 * (diff_u + diff_v)
    return jnp.mean(diff_map) if reduction == "mean" else jnp.sum(diff_map)


if __name__ == "__main__":
    key = jax.random.PRNGKey(0)
    kx, ky = jax.random.split(key)

    # Test 1: f32, mean reduction, 16x16 images (H*W=256 -> lane-dense roll path).
    x = jax.random.normal(kx, (2, 4, 16, 16), dtype=jnp.float32)
    y = jax.random.normal(ky, (2, 4, 16, 16), dtype=jnp.float32)
    out = jax.block_until_ready(gradient_difference_2d(x, y, reduction="mean"))
    ref = _reference(x, y, reduction="mean")
    assert jnp.allclose(out, ref, atol=1e-5, rtol=1e-5), (out, ref)

    # Test 2: bf16 inputs streamed natively, sum reduction.
    xb = jax.random.normal(kx, (3, 1, 16, 16), dtype=jnp.float32).astype(jnp.bfloat16)
    yb = jax.random.normal(ky, (3, 1, 16, 16), dtype=jnp.float32).astype(jnp.bfloat16)
    out2 = jax.block_until_ready(gradient_difference_2d(xb, yb, reduction="sum"))
    ref2 = _reference(xb, yb, reduction="sum")
    assert jnp.allclose(out2, ref2, atol=1e-4, rtol=1e-5), (out2, ref2)

    # Test 3: tail-masked partial block (bc=10, tb=8) -- no HBM padding copy.
    x3 = jax.random.normal(kx, (2, 5, 16, 16), dtype=jnp.float32)
    y3 = jax.random.normal(ky, (2, 5, 16, 16), dtype=jnp.float32)
    out3 = jax.block_until_ready(
        gradient_difference_2d(x3, y3, reduction="mean", max_images_per_block=8))
    ref3 = _reference(x3, y3, reduction="mean")
    assert jnp.allclose(out3, ref3, atol=1e-5, rtol=1e-5), (out3, ref3)

    # Test 4: H*W=96 not a multiple of 128 -> slice+concat shift fallback.
    x4 = jax.random.normal(kx, (1, 3, 8, 12), dtype=jnp.float32)
    y4 = jax.random.normal(ky, (1, 3, 8, 12), dtype=jnp.float32)
    out4 = jax.block_until_ready(gradient_difference_2d(x4, y4, reduction="mean"))
    ref4 = _reference(x4, y4, reduction="mean")
    assert jnp.allclose(out4, ref4, atol=1e-5, rtol=1e-5), (out4, ref4)

    print("KERNEL_OK")
</pallas_src>

<mosaic_0001>
module attributes {stable_mosaic.version = 11 : i64} {
  func.func @_gd_kernel(%arg0: i32, %arg1: i32, %arg2: memref<2x256xi32, #tpu.memory_space<vmem>>, %arg3: memref<8x256xf32, #tpu.memory_space<vmem>>, %arg4: memref<8x256xf32, #tpu.memory_space<vmem>>, %arg5: memref<1x1x1xf32, #tpu.memory_space<vmem>>, %arg6: memref<1x256xf32, #tpu.memory_space<vmem>>) attributes {dimension_semantics = [#tpu.dimension_semantics<arbitrary>, #tpu.dimension_semantics<arbitrary>], iteration_bounds = array<i64: 1, 1>, scalar_prefetch = 0 : i64, scratch_operands = 1 : i64, tpu.core_type = #tpu.core_type<tc>, window_params = [{pipeline_mode = #tpu.pipeline_mode<synchronous>, transform_indices = @transform_0, window_bounds = array<i64: 2, 256>}, {transform_indices = @transform_1, window_bounds = array<i64: 8, 256>}, {transform_indices = @transform_2, window_bounds = array<i64: 8, 256>}, {transform_indices = @transform_3, window_bounds = array<i64: 1, 1, 1>}]} {
    %c0_i32 = arith.constant 0 : i32
    %0 = arith.cmpi eq, %arg1, %c0_i32 : i32
    %1 = arith.extui %0 : i1 to i32
    %c0_i32_0 = arith.constant 0 : i32
    %2 = arith.cmpi ne, %1, %c0_i32_0 : i32
    scf.if %2 {
      %cst_20 = arith.constant 0.000000e+00 : f32
      %68 = vector.broadcast %cst_20 : f32 to vector<1x256xf32>
      %c0_21 = arith.constant 0 : index
      %c0_22 = arith.constant 0 : index
      %69 = vector.load %arg6[%c0_21, %c0_22] : memref<1x256xf32, #tpu.memory_space<vmem>>, vector<1x256xf32>
      tpu.vector_store %arg6[%c0_21, %c0_22], %68 {strides = array<i32>} : memref<1x256xf32, #tpu.memory_space<vmem>>, vector<1x256xf32>,
    } else {
    }
    %c0 = arith.constant 0 : index
    %c0_1 = arith.constant 0 : index
    %3 = vector.load %arg3[%c0, %c0_1] : memref<8x256xf32, #tpu.memory_space<vmem>>, vector<8x256xf32>
    %c0_2 = arith.constant 0 : index
    %c0_3 = arith.constant 0 : index
    %4 = vector.load %arg4[%c0_2, %c0_3] : memref<8x256xf32, #tpu.memory_space<vmem>>, vector<8x256xf32>
    %c0_4 = arith.constant 0 : index
    %c0_5 = arith.constant 0 : index
    %5 = vector.load %arg2[%c0_4, %c0_5] : memref<2x256xi32, #tpu.memory_space<vmem>>, vector<1x256xi32>
    %c1 = arith.constant 1 : index
    %c0_6 = arith.constant 0 : index
    %6 = vector.load %arg2[%c1, %c0_6] : memref<2x256xi32, #tpu.memory_space<vmem>>, vector<1x256xi32>
    %c0_i32_7 = arith.constant 0 : i32
    %7 = vector.broadcast %c0_i32_7 : i32 to vector<1x256xi32>
    %8 = arith.cmpi eq, %5, %7 : vector<1x256xi32>
    %c15_i32 = arith.constant 15 : i32
    %9 = vector.broadcast %c15_i32 : i32 to vector<1x256xi32>
    %10 = arith.cmpi eq, %5, %9 : vector<1x256xi32>
    %c0_i32_8 = arith.constant 0 : i32
    %11 = vector.broadcast %c0_i32_8 : i32 to vector<1x256xi32>
    %12 = arith.cmpi eq, %6, %11 : vector<1x256xi32>
    %c15_i32_9 = arith.constant 15 : i32
    %13 = vector.broadcast %c15_i32_9 : i32 to vector<1x256xi32>
    %14 = arith.cmpi eq, %6, %13 : vector<1x256xi32>
    %c16_i32 = arith.constant 16 : i32
    %15 = tpu.dynamic_rotate %3 by %c16_i32 dim 1 : vector<8x256xf32>, i32 -> vector<8x256xf32>
    %16 = vector.shape_cast %8 : vector<1x256xi1> to vector<1x256xi1>
    %17 = vector.broadcast %16 : vector<1x256xi1> to vector<8x256xi1>
    %18 = arith.select %17, %3, %15 : vector<8x256xi1>, vector<8x256xf32>
    %c240_i32 = arith.constant 240 : i32
    %19 = tpu.dynamic_rotate %3 by %c240_i32 dim 1 : vector<8x256xf32>, i32 -> vector<8x256xf32>
    %20 = vector.shape_cast %10 : vector<1x256xi1> to vector<1x256xi1>
    %21 = vector.broadcast %20 : vector<1x256xi1> to vector<8x256xi1>
    %22 = arith.select %21, %3, %19 : vector<8x256xi1>, vector<8x256xf32>
    %23 = arith.subf %22, %18 : vector<8x256xf32>
    %24 = math.absf %23 : vector<8x256xf32>
    %c16_i32_10 = arith.constant 16 : i32
    %25 = tpu.dynamic_rotate %4 by %c16_i32_10 dim 1 : vector<8x256xf32>, i32 -> vector<8x256xf32>
    %26 = vector.shape_cast %8 : vector<1x256xi1> to vector<1x256xi1>
    %27 = vector.broadcast %26 : vector<1x256xi1> to vector<8x256xi1>
    %28 = arith.select %27, %4, %25 : vector<8x256xi1>, vector<8x256xf32>
    %c240_i32_11 = arith.constant 240 : i32
    %29 = tpu.dynamic_rotate %4 by %c240_i32_11 dim 1 : vector<8x256xf32>, i32 -> vector<8x256xf32>
    %30 = vector.shape_cast %10 : vector<1x256xi1> to vector<1x256xi1>
    %31 = vector.broadcast %30 : vector<1x256xi1> to vector<8x256xi1>
    %32 = arith.select %31, %4, %29 : vector<8x256xi1>, vector<8x256xf32>
    %33 = arith.subf %32, %28 : vector<8x256xf32>
    %34 = math.absf %33 : vector<8x256xf32>
    %35 = arith.subf %24, %34 : vector<8x256xf32>
    %36 = math.absf %35 : vector<8x256xf32>
    %c1_i32 = arith.constant 1 : i32
    %37 = tpu.dynamic_rotate %3 by %c1_i32 dim 1 : vector<8x256xf32>, i32 -> vector<8x256xf32>
    %38 = vector.shape_cast %12 : vector<1x256xi1> to vector<1x256xi1>
    %39 = vector.broadcast %38 : vector<1x256xi1> to vector<8x256xi1>
    %40 = arith.select %39, %3, %37 : vector<8x256xi1>, vector<8x256xf32>
    %c255_i32 = arith.constant 255 : i32
    %41 = tpu.dynamic_rotate %3 by %c255_i32 dim 1 : vector<8x256xf32>, i32 -> vector<8x256xf32>
    %42 = vector.shape_cast %14 : vector<1x256xi1> to vector<1x256xi1>
    %43 = vector.broadcast %42 : vector<1x256xi1> to vector<8x256xi1>
    %44 = arith.select %43, %3, %41 : vector<8x256xi1>, vector<8x256xf32>
    %45 = arith.subf %44, %40 : vector<8x256xf32>
    %46 = math.absf %45 : vector<8x256xf32>
    %c1_i32_12 = arith.constant 1 : i32
    %47 = tpu.dynamic_rotate %4 by %c1_i32_12 dim 1 : vector<8x256xf32>, i32 -> vector<8x256xf32>
    %48 = vector.shape_cast %12 : vector<1x256xi1> to vector<1x256xi1>
    %49 = vector.broadcast %48 : vector<1x256xi1> to vector<8x256xi1>
    %50 = arith.select %49, %4, %47 : vector<8x256xi1>, vector<8x256xf32>
    %c255_i32_13 = arith.constant 255 : i32
    %51 = tpu.dynamic_rotate %4 by %c255_i32_13 dim 1 : vector<8x256xf32>, i32 -> vector<8x256xf32>
    %52 = vector.shape_cast %14 : vector<1x256xi1> to vector<1x256xi1>
    %53 = vector.broadcast %52 : vector<1x256xi1> to vector<8x256xi1>
    %54 = arith.select %53, %4, %51 : vector<8x256xi1>, vector<8x256xf32>
    %55 = arith.subf %54, %50 : vector<8x256xf32>
    %56 = math.absf %55 : vector<8x256xf32>
    %57 = arith.subf %46, %56 : vector<8x256xf32>
    %58 = math.absf %57 : vector<8x256xf32>
    %59 = arith.addf %36, %58 : vector<8x256xf32>
    %c0_14 = arith.constant 0 : index
    %c0_15 = arith.constant 0 : index
    %60 = vector.load %arg6[%c0_14, %c0_15] : memref<1x256xf32, #tpu.memory_space<vmem>>, vector<1x256xf32>
    %cst = arith.constant dense<0.000000e+00> : vector<256xf32>
    %61 = vector.multi_reduction <add>, %59, %cst [0] : vector<8x256xf32> to vector<256xf32>
    %62 = vector.shape_cast %61 : vector<256xf32> to vector<1x256xf32>
    %63 = arith.addf %60, %62 : vector<1x256xf32>
    %c0_16 = arith.constant 0 : index
    %c0_17 = arith.constant 0 : index
    %64 = vector.load %arg6[%c0_16, %c0_17] : memref<1x256xf32, #tpu.memory_space<vmem>>, vector<1x256xf32>
    tpu.vector_store %arg6[%c0_16, %c0_17], %63 {strides = array<i32>} : memref<1x256xf32, #tpu.memory_space<vmem>>, vector<1x256xf32>,
    %c0_i32_18 = arith.constant 0 : i32
    %65 = arith.cmpi eq, %arg1, %c0_i32_18 : i32
    %66 = arith.extui %65 : i1 to i32
    %c0_i32_19 = arith.constant 0 : i32
    %67 = arith.cmpi ne, %66, %c0_i32_19 : i32
    scf.if %67 {
      %c0_20 = arith.constant 0 : index
      %c0_21 = arith.constant 0 : index
      %68 = vector.load %arg6[%c0_20, %c0_21] : memref<1x256xf32, #tpu.memory_space<vmem>>, vector<1x256xf32>
      %69 = vector.shape_cast %68 : vector<1x256xf32> to vector<1x1x256xf32>
      %cst_22 = arith.constant dense<0.000000e+00> : vector<1xf32>
      %70 = vector.multi_reduction <add>, %69, %cst_22 [1, 2] : vector<1x1x256xf32> to vector<1xf32>
      %71 = vector.shape_cast %70 : vector<1xf32> to vector<1x1x1xf32>
      %72 = vector.extract %71[0, 0, 0] : f32 from vector<1x1x1xf32>
      %cst_23 = arith.constant 2.44140625E-4 : f32
      %73 = arith.mulf %72, %cst_23 : f32
      %74 = vector.broadcast %73 : f32 to vector<1x1x1xf32>
      %c0_24 = arith.constant 0 : index
      %c0_25 = arith.constant 0 : index
      %c0_26 = arith.constant 0 : index
      %75 = vector.load %arg5[%c0_24, %c0_25, %c0_26] : memref<1x1x1xf32, #tpu.memory_space<vmem>>, vector<1x1x1xf32>
      tpu.vector_store %arg5[%c0_24, %c0_25, %c0_26], %74 {strides = array<i32>} : memref<1x1x1xf32, #tpu.memory_space<vmem>>, vector<1x1x1xf32>,
    } else {
    }
    return
  }
  func.func @transform_0(%arg0: i32, %arg1: i32) -> (i32, i32) {
    %c0_i32 = arith.constant 0 : i32
    %c0_i32_0 = arith.constant 0 : i32
    %c0_i32_1 = arith.constant 0 : i32
    return %c0_i32, %c0_i32_0 : i32, i32
  }
  func.func @transform_1(%arg0: i32, %arg1: i32) -> (i32, i32) {
    %c1_i32 = arith.constant 1 : i32
    %0 = arith.muli %arg0, %c1_i32 : i32
    %1 = arith.addi %0, %arg1 : i32
    %c0_i32 = arith.constant 0 : i32
    %2 = arith.minsi %1, %c0_i32 : i32
    %c0_i32_0 = arith.constant 0 : i32
    %c0_i32_1 = arith.constant 0 : i32
    return %2, %c0_i32_0 : i32, i32
  }
  func.func @transform_2(%arg0: i32, %arg1: i32) -> (i32, i32) {
    %c1_i32 = arith.constant 1 : i32
    %0 = arith.muli %arg0, %c1_i32 : i32
    %1 = arith.addi %0, %arg1 : i32
    %c0_i32 = arith.constant 0 : i32
    %2 = arith.minsi %1, %c0_i32 : i32
    %c0_i32_0 = arith.constant 0 : i32
    %c0_i32_1 = arith.constant 0 : i32
    return %2, %c0_i32_0 : i32, i32
  }
  func.func @transform_3(%arg0: i32, %arg1: i32) -> (i32, i32, i32) {
    %c0_i32 = arith.constant 0 : i32
    %c0_i32_0 = arith.constant 0 : i32
    %c0_i32_1 = arith.constant 0 : i32
    return %arg0, %c0_i32, %c0_i32_0 : i32, i32, i32
  }
}

</mosaic_0001>

<llo_original>
// kernel: tpu_custom_call.1
$region0: #{tpu_custom_call.1}
  #allocation0 [shape = 'u32[]', space=smem, size = 0x4, offset = 0x4, fixed_abs, tag = 'smem constant byte address 0x4 - core index']
  #allocation1 [shape = 'u32[144,128]{1,0:T(1,128)}', space=vmem, size = 0x12000, scoped, tag = 'internal scratch']
  #allocation2 [shape = 'f32[1,256]{1,0:T(1,128)}', space=vmem, size = 0x400, scoped, tag = 'scratch operand']
  %s0 = inlined_call_operand.hbm [shape: s32[2,256], index: 0, kind: input, shape index: {}]
  %s1 = inlined_call_operand.hbm [shape: f32[8,256], index: 1, kind: input, shape index: {}]
  %s2 = inlined_call_operand.hbm [shape: f32[8,256], index: 2, kind: input, shape index: {}]
  %s3 = inlined_call_operand.hbm [shape: f32[1,1,1], index: 3, kind: output, shape index: {}]
  %s4 = sld [smem:[#allocation0]]
  $region42: #{tpu_custom_call.1} parent=0
    _
  %s6 = ssub.s32 1, %s4
  %s7 = scalar_select 0, %s6, %s4
  $region1: #{tpu_custom_call.1} parent=0
    #allocation3 [shape = 'u8[2048]{0}', space=vmem, size = 0x800, scoped, tag = 'input window, operand 0, single buffered']
    #allocation4 [shape = 's32[1]{0}', space=sflag, size = 0x4, scoped, tag = 'scoped memory for tpu_custom_call.1']
    #allocation5 [shape = 's32[1]{0}', space=sflag, size = 0x4, scoped, tag = 'scoped memory for tpu_custom_call.1']
    #allocation6 [shape = 'u8[8192]{0}', space=vmem, size = 0x2000, scoped, tag = 'input window, operand 1, single buffered']
    #allocation7 [shape = 's32[1]{0}', space=sflag, size = 0x4, scoped, tag = 'scoped memory for tpu_custom_call.1']
    #allocation8 [shape = 'u8[8192]{0}', space=vmem, size = 0x2000, scoped, tag = 'input window, operand 2, single buffered']
    #allocation9 [shape = 'u8[512]{0}', space=vmem, size = 0x400, scoped, tag = 'output window, operand 0, single buffered']
    %8 = vsyncpa [#allocation4], 0
    %9 = vsyncpa [#allocation7], 0
    %10 = vsyncpa [#allocation5], 0
    // Predicated region
    $region2: #{tpu_custom_call.1} parent=1 // pred_check
      _
    $region3: #{tpu_custom_call.1} parent=1 // pred_check_branch
      %12 = sbr.rel (0) target = $region5
    $region4: #{tpu_custom_call.1} parent=1 // pred_region
      %s14 = ssub.s32 64, 64
      %15 = vsyncadd [#allocation4], %s14
      %s17 = sshll.u32 [#allocation3], 4
      %s18 = int_to_ptr.vmem [resolvable:$true] %s17
      %20 = dma.hbm_to_vmem [thread:$0]  %s0, 64, %s18, [#allocation4]
    $region5: #{tpu_custom_call.1} parent=1 // pred_fallthru
      _
    // Predicated region
    $region6: #{tpu_custom_call.1} parent=1 // pred_check
      _
    $region7: #{tpu_custom_call.1} parent=1 // pred_check_branch
      %22 = sbr.rel (0) target = $region9
    $region8: #{tpu_custom_call.1} parent=1 // pred_region
      %s23 = sadd.s32 0, 0
      %p24 = scmp.lt.s32.totalorder %s23, 0
      %s25 = scalar_select %p24, %s23, 0
      %s27 = ssub.s32 256, 256
      %28 = vsyncadd [#allocation7], %s27
      %s29 = smul.addr %s25, 2
      %s30 = smul.addr %s29, 128
      %s31 = scalar_lea.hbm %s1, %s30
      %s33 = sshll.u32 [#allocation6], 4
      %s34 = int_to_ptr.vmem [resolvable:$true] %s33
      %36 = dma.hbm_to_vmem [thread:$0]  %s31, 256, %s34, [#allocation7]
    $region9: #{tpu_custom_call.1} parent=1 // pred_fallthru
      _
    // Predicated region
    $region10: #{tpu_custom_call.1} parent=1 // pred_check
      _
    $region11: #{tpu_custom_call.1} parent=1 // pred_check_branch
      %38 = sbr.rel (0) target = $region13
    $region12: #{tpu_custom_call.1} parent=1 // pred_region
      %s39 = sadd.s32 0, 0
      %p40 = scmp.lt.s32.totalorder %s39, 0
      %s41 = scalar_select %p40, %s39, 0
      %s43 = ssub.s32 256, 256
      %44 = vsyncadd [#allocation7], %s43
      %s45 = smul.addr %s41, 2
      %s46 = smul.addr %s45, 128
      %s47 = scalar_lea.hbm %s2, %s46
      %s49 = sshll.u32 [#allocation8], 4
      %s50 = int_to_ptr.vmem [resolvable:$true] %s49
      %52 = dma.hbm_to_vmem [thread:$0]  %s47, 256, %s50, [#allocation7]
    $region13: #{tpu_custom_call.1} parent=1 // pred_fallthru
      _
    // Predicated region
    $region14: #{tpu_custom_call.1} parent=1 // pred_check
      _
    $region15: #{tpu_custom_call.1} parent=1 // pred_check_branch
      %54 = sbr.rel (0) target = $region17
    $region16: #{tpu_custom_call.1} parent=1 // pred_region
      %55 = dma.done [#allocation4], 64
    $region17: #{tpu_custom_call.1} parent=1 // pred_fallthru
      _
    // Predicated region
    $region18: #{tpu_custom_call.1} parent=1 // pred_check
      _
    $region19: #{tpu_custom_call.1} parent=1 // pred_check_branch
      %57 = sbr.rel (0) target = $region21
    $region20: #{tpu_custom_call.1} parent=1 // pred_region
      %58 = dma.done [#allocation7], 256
    $region21: #{tpu_custom_call.1} parent=1 // pred_fallthru
      _
    // Predicated region
    $region22: #{tpu_custom_call.1} parent=1 // pred_check
      _
    $region23: #{tpu_custom_call.1} parent=1 // pred_check_branch
      %60 = sbr.rel (0) target = $region25
    $region24: #{tpu_custom_call.1} parent=1 // pred_region
      %61 = dma.done [#allocation7], 256
    $region25: #{tpu_custom_call.1} parent=1 // pred_fallthru
      _
    %s62 = sadd.s32 0, 0
    %p63 = scmp.lt.s32.totalorder %s62, 0
    %s64 = scalar_select %p63, %s62, 0
    %s65 = sadd.s32 0, 0
    %p66 = scmp.lt.s32.totalorder %s65, 0
    %s67 = scalar_select %p66, %s65, 0
    %p68 = scmp.eq.s32.totalorder 0, 0
    // Predicated region
    $region26: #{tpu_custom_call.1} parent=1 // pred_check
      %p69 = pneg %p68
    $region27: #{tpu_custom_call.1} parent=1 // pred_check_branch
      %71 = sbr.rel (%p69) target = $region29
    $region28: #{tpu_custom_call.1} parent=1 // pred_region
      %v72 = vlaneseq
      %vm73 = vcmp.ge.s32.totalorder %v72, 0
      %vm74 = vcmp.lt.s32.totalorder %v72, 256
      %vm75 = vmand %vm73, %vm74
      %76 = vst.msk [vmem:[#allocation2] sm:$0x3] %vm75, 0.0
    $region29: #{tpu_custom_call.1} parent=1 // pred_fallthru
      _
    %v77 = vld [vmem:[#allocation6] sm:$0xff]
    %v78 = vld [vmem:[#allocation6 + $0x8] sm:$0xff]
    %v79 = vld [vmem:[#allocation8] sm:$0xff]
    %v80 = vld [vmem:[#allocation8 + $0x8] sm:$0xff]
    %v81 = vld [vmem:[#allocation3] ss:$2 sm:$0x3]
    %s82 = scalar_lea.vmem [#allocation3], 1
    %v83 = vld [vmem:[%s82] ss:$2 sm:$0x3]
    %vm84 = vcmp.eq.s32.totalorder %v81, 0
    %vm85 = vcmp.eq.s32.totalorder %v81, 15
    %vm86 = vcmp.eq.s32.totalorder %v83, 0
    %vm87 = vcmp.eq.s32.totalorder %v83, 15
    %88 = vrot.lane.b32.xlu0 %v77, 16
    %v89 = vpop.permute.xlu0 %88
    %90 = vrot.lane.b32.xlu0 %v78, 16
    %v91 = vpop.permute.xlu0 %90
    %v92 = vlaneseq
    %v93 = vand.u32 %v92, 127
    %vm94 = vcmp.lt.s32.totalorder %v93, 16
    %v95 = vsel %vm94, %v89, %v91
    %v96 = vsel %vm94, %v91, %v89
    %v97 = vsel %vm84, 1, 0
    %v98 = vlaneseq
    %v99 = vshrl.u32 %v98, 7
    %v100 = vsub.s32 0, %v99
    %v101 = vrot.slane %v97, %v100
    %v102 = vlaneseq
    %v103 = vshrl.u32 %v102, 7
    %v104 = vsub.s32 1, %v103
    %v105 = vrot.slane %v97, %v104
    %vm106 = vcmp.eq.s32.totalorder %v101, 1
    %vm107 = vcmp.eq.s32.totalorder %v105, 1
    %v108 = vsel %vm106, %v77, %v96
    %v109 = vsel %vm107, %v78, %v95
    %110 = vrot.lane.b32.xlu0 %v77, 112
    %v111 = vpop.permute.xlu0 %110
    %112 = vrot.lane.b32.xlu0 %v78, 112
    %v113 = vpop.permute.xlu0 %112
    %vm114 = vcmp.lt.s32.totalorder %v93, 112
    %v115 = vsel %vm114, %v111, %v113
    %v116 = vsel %vm114, %v113, %v111
    %v117 = vsel %vm85, 1, 0
    %v118 = vlaneseq
    %v119 = vshrl.u32 %v118, 7
    %v120 = vsub.s32 0, %v119
    %v121 = vrot.slane %v117, %v120
    %v122 = vlaneseq
    %v123 = vshrl.u32 %v122, 7
    %v124 = vsub.s32 1, %v123
    %v125 = vrot.slane %v117, %v124
    %vm126 = vcmp.eq.s32.totalorder %v121, 1
    %vm127 = vcmp.eq.s32.totalorder %v125, 1
    %v128 = vsel %vm126, %v77, %v115
    %v129 = vsel %vm127, %v78, %v116
    %v130 = vsub.f32 %v128, %v108
    %v131 = vsub.f32 %v129, %v109
    %v132 = vand.u32 2147483647, %v130
    %v133 = vand.u32 2147483647, %v131
    %134 = vrot.lane.b32.xlu0 %v79, 16
    %v135 = vpop.permute.xlu0 %134
    %136 = vrot.lane.b32.xlu0 %v80, 16
    %v137 = vpop.permute.xlu0 %136
    %v138 = vsel %vm94, %v135, %v137
    %v139 = vsel %vm94, %v137, %v135
    %v140 = vsel %vm106, %v79, %v139
    %v141 = vsel %vm107, %v80, %v138
    %142 = vrot.lane.b32.xlu0 %v79, 112
    %v143 = vpop.permute.xlu0 %142
    %144 = vrot.lane.b32.xlu0 %v80, 112
    %v145 = vpop.permute.xlu0 %144
    %v146 = vsel %vm114, %v143, %v145
    %v147 = vsel %vm114, %v145, %v143
    %v148 = vsel %vm126, %v79, %v146
    %v149 = vsel %vm127, %v80, %v147
    %v150 = vsub.f32 %v148, %v140
    %v151 = vsub.f32 %v149, %v141
    %v152 = vand.u32 2147483647, %v150
    %v153 = vand.u32 2147483647, %v151
    %v154 = vsub.f32 %v132, %v152
    %v155 = vsub.f32 %v133, %v153
    %v156 = vand.u32 2147483647, %v154
    %v157 = vand.u32 2147483647, %v155
    %158 = vrot.lane.b32.xlu0 %v77, 1
    %v159 = vpop.permute.xlu0 %158
    %160 = vrot.lane.b32.xlu0 %v78, 1
    %v161 = vpop.permute.xlu0 %160
    %vm162 = vcmp.lt.s32.totalorder %v93, 1
    %v163 = vsel %vm162, %v159, %v161
    %v164 = vsel %vm162, %v161, %v159
    %v165 = vsel %vm86, 1, 0
    %v166 = vlaneseq
    %v167 = vshrl.u32 %v166, 7
    %v168 = vsub.s32 0, %v167
    %v169 = vrot.slane %v165, %v168
    %v170 = vlaneseq
    %v171 = vshrl.u32 %v170, 7
    %v172 = vsub.s32 1, %v171
    %v173 = vrot.slane %v165, %v172
    %vm174 = vcmp.eq.s32.totalorder %v169, 1
    %vm175 = vcmp.eq.s32.totalorder %v173, 1
    %v176 = vsel %vm174, %v77, %v164
    %v177 = vsel %vm175, %v78, %v163
    %178 = vrot.lane.b32.xlu0 %v77, 127
    %v179 = vpop.permute.xlu0 %178
    %180 = vrot.lane.b32.xlu0 %v78, 127
    %v181 = vpop.permute.xlu0 %180
    %vm182 = vcmp.lt.s32.totalorder %v93, 127
    %v183 = vsel %vm182, %v179, %v181
    %v184 = vsel %vm182, %v181, %v179
    %v185 = vsel %vm87, 1, 0
    %v186 = vlaneseq
    %v187 = vshrl.u32 %v186, 7
    %v188 = vsub.s32 0, %v187
    %v189 = vrot.slane %v185, %v188
    %v190 = vlaneseq
    %v191 = vshrl.u32 %v190, 7
    %v192 = vsub.s32 1, %v191
    %v193 = vrot.slane %v185, %v192
    %vm194 = vcmp.eq.s32.totalorder %v189, 1
    %vm195 = vcmp.eq.s32.totalorder %v193, 1
    %v196 = vsel %vm194, %v77, %v183
    %v197 = vsel %vm195, %v78, %v184
    %v198 = vsub.f32 %v196, %v176
    %v199 = vsub.f32 %v197, %v177
    %v200 = vand.u32 2147483647, %v198
    %v201 = vand.u32 2147483647, %v199
    %202 = vrot.lane.b32.xlu0 %v79, 1
    %v203 = vpop.permute.xlu0 %202
    %204 = vrot.lane.b32.xlu0 %v80, 1
    %v205 = vpop.permute.xlu0 %204
    %v206 = vsel %vm162, %v203, %v205
    %v207 = vsel %vm162, %v205, %v203
    %v208 = vsel %vm174, %v79, %v207
    %v209 = vsel %vm175, %v80, %v206
    %210 = vrot.lane.b32.xlu0 %v79, 127
    %v211 = vpop.permute.xlu0 %210
    %212 = vrot.lane.b32.xlu0 %v80, 127
    %v213 = vpop.permute.xlu0 %212
    %v214 = vsel %vm182, %v211, %v213
    %v215 = vsel %vm182, %v213, %v211
    %v216 = vsel %vm194, %v79, %v214
    %v217 = vsel %vm195, %v80, %v215
    %v218 = vsub.f32 %v216, %v208
    %v219 = vsub.f32 %v217, %v209
    %v220 = vand.u32 2147483647, %v218
    %v221 = vand.u32 2147483647, %v219
    %v222 = vsub.f32 %v200, %v220
    %v223 = vsub.f32 %v201, %v221
    %v224 = vand.u32 2147483647, %v222
    %v225 = vand.u32 2147483647, %v223
    %v226 = vadd.f32 %v156, %v224
    %v227 = vadd.f32 %v157, %v225
    %v228 = vld [vmem:[#allocation2] sm:$0x3]
    %v229 = vrot.slane %v226, 4
    %v230 = vadd.f32 %v226, %v229
    %v231 = vrot.slane %v230, 2
    %v232 = vadd.f32 %v230, %v231
    %v233 = vrot.slane %v232, 1
    %v234 = vadd.f32 %v232, %v233
    %v235 = vrot.slane %v227, 4
    %v236 = vadd.f32 %v227, %v235
    %v237 = vrot.slane %v236, 2
    %v238 = vadd.f32 %v236, %v237
    %v239 = vrot.slane %v238, 1
    %v240 = vadd.f32 %v238, %v239
    %v243 = vcombine.low %v234, %v240
    %v245 = vunpack.c.l.s4 1966171168
    %v246 = vunpack.c.0.s8 %v245
    %v247 = vlaneseq
    %v248 = vshrl.u32 %v247, 7
    %v249 = vsub.s32 %v246, %v248
    %v250 = vrot.slane %v243, %v249
    %v252 = vunpack.c.l.s4 1966171168
    %v253 = vunpack.c.0.s8 %v252
    %v254 = vlaneseq
    %v255 = vshrl.u32 %v254, 7
    %v256 = vsub.s32 %v253, %v255
    %v257 = vrot.slane %v250, %v256
    %v259 = vadd.f32 %v228, %v257
    %v260 = vlaneseq
    %vm261 = vcmp.ge.s32.totalorder %v260, 0
    %vm262 = vcmp.lt.s32.totalorder %v260, 256
    %vm263 = vmand %vm261, %vm262
    %264 = vst.msk [vmem:[#allocation2] sm:$0x3] %vm263, %v259
    // Predicated region
    $region30: #{tpu_custom_call.1} parent=1 // pred_check
      %p265 = pneg %p68
    $region31: #{tpu_custom_call.1} parent=1 // pred_check_branch
      %267 = sbr.rel (%p265) target = $region33
    $region32: #{tpu_custom_call.1} parent=1 // pred_region
      %v268 = vld [vmem:[#allocation2] sm:$0x3]
      %v270 = vlaneseq
      %v271 = vshrl.u32 %v270, 7
      %v272 = vsub.s32 0, %v271
      %v273 = vrot.slane %v268, %v272
      %v274 = vlaneseq
      %v275 = vshrl.u32 %v274, 7
      %v276 = vsub.s32 1, %v275
      %v277 = vrot.slane %v268, %v276
      %vm280 = vcmask 1040384
      %v281 = vsel %vm280, %v273, 0.0
      %v282 = vsel %vm280, %v277, 0.0
      %v283 = vadd.f32 %v281, %v282
      %284 = vadd.xlane.f32.xlu0 %v283
      %v285 = vpop.xlane.xlu0 %284
      %v286 = vrot.slane %v285, 4
      %v287 = vadd.f32 %v285, %v286
      %v288 = vrot.slane %v287, 2
      %v289 = vadd.f32 %v287, %v288
      %v290 = vrot.slane %v289, 1
      %v291 = vadd.f32 %v289, %v290
      %s292 = vtos %v291
      %s293 = smul.f32 %s292, 0.00024414063
      %v294 = vstv %s293
      %vm295 = vcmask 0
      %296 = vst.msk [vmem:[#allocation9] sm:$0x1] %vm295, %v294
    $region33: #{tpu_custom_call.1} parent=1 // pred_fallthru
      _
    // Predicated region
    $region34: #{tpu_custom_call.1} parent=1 // pred_check
      _
    $region35: #{tpu_custom_call.1} parent=1 // pred_check_branch
      %298 = sbr.rel (0) target = $region37
    $region36: #{tpu_custom_call.1} parent=1 // pred_region
      %s300 = ssub.s32 16, 16
      %301 = vsyncadd [#allocation5], %s300
      %s303 = sshll.u32 [#allocation9], 4
      %s304 = int_to_ptr.vmem [resolvable:$true] %s303
      %306 = dma.vmem_to_hbm [thread:$0]  %s304, 16, %s3, [#allocation5]
    $region37: #{tpu_custom_call.1} parent=1 // pred_fallthru
      _
    // Predicated region
    $region38: #{tpu_custom_call.1} parent=1 // pred_check
      _
    $region39: #{tpu_custom_call.1} parent=1 // pred_check_branch
      %308 = sbr.rel (0) target = $region41
    $region40: #{tpu_custom_call.1} parent=1 // pred_region
      %309 = dma.done [#allocation5], 16
    $region41: #{tpu_custom_call.1} parent=1 // pred_fallthru
      _
    %310 = vsyncpa [#allocation4], 1
    %311 = vsyncpa [#allocation7], 1
    %312 = vsyncpa [#allocation5], 1

</llo_original>
